<compile_context>
chip_gen: v7x
topology: tpu7x:2x2x1
jax: 0.10.0
libtpu: 0.0.40
codegen_flags: <defaults>
</compile_context>

<pallas_src>
import functools

import jax
import jax.numpy as jnp
from jax.experimental import pallas as pl
from jax.experimental.pallas import tpu as pltpu


def _layernorm_kernel(x_ref, gamma_ref, beta_ref, o_ref, *, eps):
    # x_ref: (tm, H) tile of rows; gamma/beta: (1, H) broadcast along rows.
    x = x_ref[...].astype(jnp.float32)
    u = jnp.mean(x, axis=-1, keepdims=True)
    xc = x - u
    s = jnp.mean(xc * xc, axis=-1, keepdims=True)           # biased variance
    inv = jax.lax.rsqrt(s + eps)                             # EUP slot (free-ish)
    y = xc * inv
    g = gamma_ref[...].astype(jnp.float32)
    b = beta_ref[...].astype(jnp.float32)
    o_ref[...] = (g * y + b).astype(o_ref.dtype)


def _round_up(v, m):
    return ((v + m - 1) // m) * m


def _choose_tm(rows, hidden, in_dtype, out_dtype,
               io_budget_bytes=24 << 20, max_tm=1024):
    """Pick the row-tile size.

    io_budget_bytes bounds the double-buffered (input + output) tile traffic so
    the kernel fits comfortably inside every generation's scoped VMEM once
    vmem_limit_bytes is raised (v5e 16 MiB default, v7x 64 MiB physical).
    """
    in_b = jnp.dtype(in_dtype).itemsize
    out_b = jnp.dtype(out_dtype).itemsize
    # Sub-32-bit dtypes pack 2+ rows per sublane -> align tile rows to 16.
    align = 16 if min(in_b, out_b) < 4 else 8
    bytes_per_row = hidden * (in_b + out_b)
    max_rows_budget = max(align, io_budget_bytes // (2 * bytes_per_row))

    tm = min(max_tm, max_rows_budget, _round_up(rows, align))
    tm = max(align, (tm // align) * align)

    # Prefer at least 2 grid steps when there is enough work, so the v7x
    # megacore ("parallel" axis) can shard rows across both TensorCores.
    if pl.cdiv(rows, tm) == 1 and rows > 2 * align:
        tm = max(align, _round_up(pl.cdiv(rows, 2), align))
    return tm


def bert_layer_norm(x, gamma, beta, eps=1e-6):
    orig_shape = x.shape
    hidden = orig_shape[-1]
    rows = 1
    for d in orig_shape[:-1]:
        rows *= d

    x2 = x.reshape(rows, hidden)
    gamma2 = gamma.reshape(1, hidden)
    beta2 = beta.reshape(1, hidden)

    out_dtype = x.dtype
    tm = _choose_tm(rows, hidden, x2.dtype, out_dtype)

    # cdiv grid + zero-padding instead of a divisibility assert, so tm can
    # stay at its roofline-optimal value for arbitrary batch*seq.
    grid_rows = pl.cdiv(rows, tm)
    rows_padded = grid_rows * tm
    if rows_padded != rows:
        # Zero rows normalize to finite values (eps > 0) and are sliced off.
        x2 = jnp.pad(x2, ((0, rows_padded - rows), (0, 0)))

    # VMEM budget: double-buffered in/out tiles + params + headroom for the
    # kernel's f32 intermediates. Capped below v7x's 64 MiB physical VMEM.
    in_b = jnp.dtype(x2.dtype).itemsize
    out_b = jnp.dtype(out_dtype).itemsize
    tile_io = 2 * tm * hidden * (in_b + out_b)
    params = 2 * hidden * (jnp.dtype(gamma2.dtype).itemsize
                           + jnp.dtype(beta2.dtype).itemsize)
    scratch = 4 * tm * hidden * 4          # f32 temporaries inside the kernel
    vmem_limit = int(min(max(tile_io + params + scratch + (2 << 20), 16 << 20),
                         56 << 20))

    kernel = functools.partial(_layernorm_kernel, eps=eps)

    out2 = pl.pallas_call(
        kernel,
        out_shape=jax.ShapeDtypeStruct((rows_padded, hidden), out_dtype),
        grid_spec=pltpu.PrefetchScalarGridSpec(
            num_scalar_prefetch=0,
            grid=(grid_rows,),
            in_specs=[
                pl.BlockSpec((tm, hidden), lambda i: (i, 0)),
                pl.BlockSpec((1, hidden), lambda i: (0, 0)),
                pl.BlockSpec((1, hidden), lambda i: (0, 0)),
            ],
            out_specs=pl.BlockSpec((tm, hidden), lambda i: (i, 0)),
        ),
        compiler_params=pltpu.CompilerParams(
            dimension_semantics=("parallel",),
            vmem_limit_bytes=vmem_limit,
        ),
    )(x2, gamma2, beta2)

    if rows_padded != rows:
        out2 = out2[:rows]
    return out2.reshape(orig_shape)


def _reference(x, gamma, beta, eps=1e-6):
    u = jnp.mean(x, axis=-1, keepdims=True)
    s = jnp.mean((x - u) ** 2, axis=-1, keepdims=True)
    xn = (x - u) / jnp.sqrt(s + eps)
    return gamma * xn + beta


if __name__ == "__main__":
    batch, seq, hidden = 2, 8, 32
    key = jax.random.PRNGKey(0)
    x = jax.random.normal(key, (batch, seq, hidden), dtype=jnp.float32)

    # Deterministic parameter init matching the module's __init__:
    gamma = jnp.ones((hidden,), dtype=jnp.float32)
    beta = jnp.zeros((hidden,), dtype=jnp.float32)

    out = bert_layer_norm(x, gamma, beta, eps=1e-6)
    out = jax.block_until_ready(out)

    ref = _reference(x, gamma, beta, eps=1e-6)
    assert out.shape == x.shape
    assert jnp.allclose(out, ref, atol=1e-5, rtol=1e-5)

    print("KERNEL_OK")
</pallas_src>

<mosaic_0001>
module attributes {stable_mosaic.version = 11 : i64} {
  func.func @_layernorm_kernel(%arg0: i32, %arg1: memref<16x32xf32, #tpu.memory_space<vmem>>, %arg2: memref<1x32xf32, #tpu.memory_space<vmem>>, %arg3: memref<1x32xf32, #tpu.memory_space<vmem>>, %arg4: memref<16x32xf32, #tpu.memory_space<vmem>>) attributes {dimension_semantics = [#tpu.dimension_semantics<parallel>], iteration_bounds = array<i64: 1>, scalar_prefetch = 0 : i64, scratch_operands = 0 : i64, tpu.core_type = #tpu.core_type<tc>, window_params = [{transform_indices = @transform_0, window_bounds = array<i64: 16, 32>}, {pipeline_mode = #tpu.pipeline_mode<synchronous>, transform_indices = @transform_1, window_bounds = array<i64: 1, 32>}, {pipeline_mode = #tpu.pipeline_mode<synchronous>, transform_indices = @transform_2, window_bounds = array<i64: 1, 32>}, {transform_indices = @transform_3, window_bounds = array<i64: 16, 32>}]} {
    %c0 = arith.constant 0 : index
    %c0_0 = arith.constant 0 : index
    %0 = vector.load %arg1[%c0, %c0_0] : memref<16x32xf32, #tpu.memory_space<vmem>>, vector<16x32xf32>
    %cst = arith.constant dense<0.000000e+00> : vector<16xf32>
    %1 = vector.multi_reduction <add>, %0, %cst [1] : vector<16x32xf32> to vector<16xf32>
    %2 = vector.shape_cast %1 : vector<16xf32> to vector<16x1xf32>
    %cst_1 = arith.constant 3.200000e+01 : f32
    %3 = vector.broadcast %cst_1 : f32 to vector<16x1xf32>
    %4 = arith.divf %2, %3 : vector<16x1xf32>
    %5 = vector.broadcast %4 : vector<16x1xf32> to vector<16x32xf32>
    %6 = arith.subf %0, %5 : vector<16x32xf32>
    %7 = arith.mulf %6, %6 : vector<16x32xf32>
    %cst_2 = arith.constant dense<0.000000e+00> : vector<16xf32>
    %8 = vector.multi_reduction <add>, %7, %cst_2 [1] : vector<16x32xf32> to vector<16xf32>
    %9 = vector.shape_cast %8 : vector<16xf32> to vector<16x1xf32>
    %cst_3 = arith.constant 3.200000e+01 : f32
    %10 = vector.broadcast %cst_3 : f32 to vector<16x1xf32>
    %11 = arith.divf %9, %10 : vector<16x1xf32>
    %cst_4 = arith.constant 9.99999997E-7 : f32
    %12 = vector.broadcast %cst_4 : f32 to vector<16x1xf32>
    %13 = arith.addf %11, %12 : vector<16x1xf32>
    %14 = math.rsqrt %13 : vector<16x1xf32>
    %15 = vector.broadcast %14 : vector<16x1xf32> to vector<16x32xf32>
    %16 = arith.mulf %6, %15 : vector<16x32xf32>
    %c0_5 = arith.constant 0 : index
    %c0_6 = arith.constant 0 : index
    %17 = vector.load %arg2[%c0_5, %c0_6] : memref<1x32xf32, #tpu.memory_space<vmem>>, vector<1x32xf32>
    %c0_7 = arith.constant 0 : index
    %c0_8 = arith.constant 0 : index
    %18 = vector.load %arg3[%c0_7, %c0_8] : memref<1x32xf32, #tpu.memory_space<vmem>>, vector<1x32xf32>
    %19 = vector.broadcast %17 : vector<1x32xf32> to vector<16x32xf32>
    %20 = arith.mulf %19, %16 : vector<16x32xf32>
    %21 = vector.broadcast %18 : vector<1x32xf32> to vector<16x32xf32>
    %22 = arith.addf %20, %21 : vector<16x32xf32>
    %c0_9 = arith.constant 0 : index
    %c0_10 = arith.constant 0 : index
    %23 = vector.load %arg4[%c0_9, %c0_10] : memref<16x32xf32, #tpu.memory_space<vmem>>, vector<16x32xf32>
    tpu.vector_store %arg4[%c0_9, %c0_10], %22 {strides = array<i32>} : memref<16x32xf32, #tpu.memory_space<vmem>>, vector<16x32xf32>,
    return
  }
  func.func @transform_0(%arg0: i32) -> (i32, i32) {
    %c0_i32 = arith.constant 0 : i32
    %c0_i32_0 = arith.constant 0 : i32
    return %arg0, %c0_i32 : i32, i32
  }
  func.func @transform_1(%arg0: i32) -> (i32, i32) {
    %c0_i32 = arith.constant 0 : i32
    %c0_i32_0 = arith.constant 0 : i32
    %c0_i32_1 = arith.constant 0 : i32
    return %c0_i32, %c0_i32_0 : i32, i32
  }
  func.func @transform_2(%arg0: i32) -> (i32, i32) {
    %c0_i32 = arith.constant 0 : i32
    %c0_i32_0 = arith.constant 0 : i32
    %c0_i32_1 = arith.constant 0 : i32
    return %c0_i32, %c0_i32_0 : i32, i32
  }
  func.func @transform_3(%arg0: i32) -> (i32, i32) {
    %c0_i32 = arith.constant 0 : i32
    %c0_i32_0 = arith.constant 0 : i32
    return %arg0, %c0_i32 : i32, i32
  }
}

</mosaic_0001>

<llo_original>
// kernel: tpu_custom_call.1
$region0: #{tpu_custom_call.1}
  #allocation0 [shape = 'u32[]', space=smem, size = 0x4, offset = 0x4, fixed_abs, tag = 'smem constant byte address 0x4 - core index']
  #allocation1 [shape = 'u32[144,128]{1,0:T(1,128)}', space=vmem, size = 0x12000, scoped, tag = 'internal scratch']
  %s0 = inlined_call_operand.hbm [shape: f32[16,32], index: 0, kind: input, shape index: {}]
  %s1 = inlined_call_operand.vmem [shape: f32[1,32], index: 1, kind: input, shape index: {}]
  %s2 = inlined_call_operand.vmem [shape: f32[1,32], index: 2, kind: input, shape index: {}]
  %s3 = inlined_call_operand.hbm [shape: f32[16,32], index: 3, kind: output, shape index: {}]
  %s4 = sld [smem:[#allocation0]]
  $region26: #{tpu_custom_call.1} parent=0
    _
  %s6 = ssub.s32 1, %s4
  %s7 = scalar_select 0, %s6, %s4
  $region1: #{tpu_custom_call.1} parent=0
    #allocation2 [shape = 'u8[8192]{0}', space=vmem, size = 0x2000, scoped, tag = 'input window, operand 0, single buffered']
    #allocation3 [shape = 's32[1]{0}', space=sflag, size = 0x4, scoped, tag = 'scoped memory for tpu_custom_call.1']
    #allocation4 [shape = 's32[1]{0}', space=sflag, size = 0x4, scoped, tag = 'scoped memory for tpu_custom_call.1']
    #allocation5 [shape = 'u8[8192]{0}', space=vmem, size = 0x2000, scoped, tag = 'output window, operand 0, single buffered']
    %8 = vsyncpa [#allocation3], 0
    %9 = vsyncpa [#allocation4], 0
    // Predicated region
    $region2: #{tpu_custom_call.1} parent=1 // pred_check
      _
    $region3: #{tpu_custom_call.1} parent=1 // pred_check_branch
      %11 = sbr.rel (0) target = $region5
    $region4: #{tpu_custom_call.1} parent=1 // pred_region
      %s13 = ssub.s32 256, 256
      %14 = vsyncadd [#allocation3], %s13
      %s15 = sshll.u32 [#allocation2], 4
      %s16 = int_to_ptr.vmem [resolvable:$true] %s15
      %21 = dma.hbm_to_vmem [thread:$0]  %s0, 256, %s16, [#allocation3], 128, 128, 8
    $region5: #{tpu_custom_call.1} parent=1 // pred_fallthru
      _
    // Predicated region
    $region6: #{tpu_custom_call.1} parent=1 // pred_check
      _
    $region7: #{tpu_custom_call.1} parent=1 // pred_check_branch
      %23 = sbr.rel (0) target = $region9
    $region8: #{tpu_custom_call.1} parent=1 // pred_region
      _
    $region9: #{tpu_custom_call.1} parent=1 // pred_fallthru
      _
    // Predicated region
    $region10: #{tpu_custom_call.1} parent=1 // pred_check
      _
    $region11: #{tpu_custom_call.1} parent=1 // pred_check_branch
      %25 = sbr.rel (0) target = $region13
    $region12: #{tpu_custom_call.1} parent=1 // pred_region
      _
    $region13: #{tpu_custom_call.1} parent=1 // pred_fallthru
      _
    // Predicated region
    $region14: #{tpu_custom_call.1} parent=1 // pred_check
      _
    $region15: #{tpu_custom_call.1} parent=1 // pred_check_branch
      %27 = sbr.rel (0) target = $region17
    $region16: #{tpu_custom_call.1} parent=1 // pred_region
      %28 = dma.done [#allocation3], 256
    $region17: #{tpu_custom_call.1} parent=1 // pred_fallthru
      _
    %v29 = vld [vmem:[#allocation2] sm:$0xff]
    %v30 = vld [vmem:[#allocation2 + $0x8] sm:$0xff]
    %vm31 = vcmask 261120
    %v32 = vsel %vm31, %v29, 0.0
    %33 = vadd.xlane.f32.xlu0 %v32
    %v34 = vpop.xlane.xlu0 %33
    %v35 = vsel %vm31, %v30, 0.0
    %36 = vadd.xlane.f32.xlu0 %v35
    %v37 = vpop.xlane.xlu0 %36
    %v38 = vrcp.pop 32.0
    %v39 = vmul.f32 %v34, %v38
    %v40 = vmul.f32 %v37, %v38
    %v41 = vsub.f32 %v29, %v39
    %v42 = vsub.f32 %v30, %v40
    %v43 = vmul.f32 %v41, %v41
    %v44 = vmul.f32 %v42, %v42
    %v45 = vsel %vm31, %v43, 0.0
    %46 = vadd.xlane.f32.xlu0 %v45
    %v47 = vpop.xlane.xlu0 %46
    %v48 = vsel %vm31, %v44, 0.0
    %49 = vadd.xlane.f32.xlu0 %v48
    %v50 = vpop.xlane.xlu0 %49
    %v51 = vmul.f32 %v47, %v38
    %v52 = vmul.f32 %v50, %v38
    %v53 = vadd.f32 %v51, 1e-06
    %v54 = vadd.f32 %v52, 1e-06
    %v55 = vrsqrt.pop %v53
    %v56 = vrsqrt.pop %v54
    %v57 = vmul.f32 %v41, %v55
    %v58 = vmul.f32 %v42, %v56
    %v59 = vld [vmem:[%s1] sm:$0x1]
    %v60 = vld [vmem:[%s2] sm:$0x1]
    %v62 = vlaneseq
    %v63 = vshrl.u32 %v62, 7
    %v64 = vsub.s32 0, %v63
    %v65 = vrot.slane %v59, %v64
    %v67 = vmul.f32 %v65, %v57
    %v68 = vmul.f32 %v65, %v58
    %v70 = vlaneseq
    %v71 = vshrl.u32 %v70, 7
    %v72 = vsub.s32 0, %v71
    %v73 = vrot.slane %v60, %v72
    %v75 = vadd.f32 %v67, %v73
    %v76 = vadd.f32 %v68, %v73
    %77 = vst.msk [vmem:[#allocation5] sm:$0xff] %vm31, %v75
    %78 = vst.msk [vmem:[#allocation5 + $0x8] sm:$0xff] %vm31, %v76
    // Predicated region
    $region18: #{tpu_custom_call.1} parent=1 // pred_check
      _
    $region19: #{tpu_custom_call.1} parent=1 // pred_check_branch
      %80 = sbr.rel (0) target = $region21
    $region20: #{tpu_custom_call.1} parent=1 // pred_region
      %s82 = ssub.s32 256, 256
      %83 = vsyncadd [#allocation4], %s82
      %s84 = sshll.u32 [#allocation5], 4
      %s85 = int_to_ptr.vmem [resolvable:$true] %s84
      %90 = dma.vmem_to_hbm [thread:$0]  %s85, 256, %s3, [#allocation4], 128, 128, 8
    $region21: #{tpu_custom_call.1} parent=1 // pred_fallthru
      _
    // Predicated region
    $region22: #{tpu_custom_call.1} parent=1 // pred_check
      _
    $region23: #{tpu_custom_call.1} parent=1 // pred_check_branch
      %92 = sbr.rel (0) target = $region25
    $region24: #{tpu_custom_call.1} parent=1 // pred_region
      %93 = dma.done [#allocation4], 256
    $region25: #{tpu_custom_call.1} parent=1 // pred_fallthru
      _
    %94 = vsyncpa [#allocation3], 1
    %95 = vsyncpa [#allocation4], 1

</llo_original>
